<compile_context>
chip_gen: v5e
topology: v5e:2x2
jax: 0.10.0
libtpu: 0.0.40
codegen_flags: <defaults>
</compile_context>

<pallas_src>
import jax
import jax.numpy as jnp
from jax.experimental import pallas as pl
from jax.experimental.pallas import tpu as pltpu

INPUT_SIZE = 4        # Input_size_Mine
HIDDEN_SIZE = 100     # logical hidden width (matches nn.Linear)
HIDDEN_PAD = 128      # lane-aligned hidden width used inside the kernel
OUT_PAD = 128         # lane-dense output width (every lane carries the scalar)
BATCH = 32            # per-sample-set batch (joint / marginal each)


def _elu(x):
    # ELU with alpha=1.0 (matches F.elu default). Clamp the exp argument so
    # the discarded positive branch can never overflow.
    # TODO(synk): switch to expm1 if gradients through this kernel are needed.
    return jnp.where(x > 0.0, x, jnp.exp(jnp.minimum(x, 0.0)) - 1.0)


def mine_kernel(x_ref, w1_ref, b1_ref, w2_ref, b2_ref, w3_ref, b3_ref, o_ref):
    # Single invocation: every operand is fully resident in VMEM.
    x = x_ref[...]                                     # (B, 4) f32
    w1 = w1_ref[...]                                   # (4, HP) f32

    # Layer 1: K = 4 is far too small for the MXU; statically-unrolled
    # broadcast multiply-adds on the VPU (lane broadcasts land on the XLU).
    h1 = b1_ref[...] + x[:, 0:1] * w1[0:1, :]          # (B, HP)
    for k in range(1, x_ref.shape[1]):
        h1 = h1 + x[:, k:k + 1] * w1[k:k + 1, :]
    h1 = _elu(h1)

    # Layer 2: the only matmul that matters -> MXU with bf16 operands,
    # f32 accumulation.
    h2 = jnp.dot(h1.astype(jnp.bfloat16), w2_ref[...],
                 preferred_element_type=jnp.float32) + b2_ref[...]
    h2 = _elu(h2)

    # Layer 3: (hidden -> 1) as VPU multiply + XLU lane-reduce; no padded
    # 128x128 w3, no second MXU pass. Padded lanes of w3_ref are zero.
    out_col = (jnp.sum(h2 * w3_ref[...], axis=-1, keepdims=True)
               + b3_ref[...])                          # (B, 1)
    # Broadcast across 128 lanes so the single store is lane-dense (unmasked).
    o_ref[...] = jnp.broadcast_to(out_col, o_ref.shape).astype(o_ref.dtype)


def pad_params(w1, b1, w2, b2, w3, b3, hidden_pad=HIDDEN_PAD):
    """Zero-pad hidden 100->128, pre-cast w2 to bf16, and store w3 as a
    (1, hidden_pad) transposed row. Call ONCE per parameter update and reuse;
    do not re-pad per forward."""
    d, h = w1.shape
    w1p = jnp.zeros((d, hidden_pad), jnp.float32).at[:, :h].set(w1)
    b1p = jnp.zeros((1, hidden_pad), jnp.float32).at[:, :h].set(b1)
    w2p = (jnp.zeros((hidden_pad, hidden_pad), jnp.float32)
           .at[:h, :h].set(w2)).astype(jnp.bfloat16)
    b2p = jnp.zeros((1, hidden_pad), jnp.float32).at[:, :h].set(b2)
    w3row = jnp.zeros((1, hidden_pad), jnp.float32).at[:, :h].set(w3[:, 0])
    b3p = jnp.reshape(b3.astype(jnp.float32), (1, 1))
    return w1p, b1p, w2p, b2p, w3row, b3p


def mine_forward(x, w1p, b1p, w2p, b2p, w3row, b3p):
    """x: (B, INPUT_SIZE) f32; params already padded via pad_params.
    For MINE training, concatenate the joint batch T(x,y) and the marginal
    batch T(x,y_shuffled) along dim 0 and make ONE call."""
    B, _ = x.shape
    bytes_accessed = (x.size * 4 + w1p.size * 4 + b1p.size * 4
                      + w2p.size * 2 + b2p.size * 4
                      + w3row.size * 4 + b3p.size * 4 + B * OUT_PAD * 4)
    cost = pl.CostEstimate(
        flops=2 * B * (INPUT_SIZE * HIDDEN_PAD + HIDDEN_PAD * HIDDEN_PAD
                       + HIDDEN_PAD),
        transcendentals=2 * B * HIDDEN_PAD,
        bytes_accessed=bytes_accessed)
    out_pad = pl.pallas_call(
        mine_kernel,
        out_shape=jax.ShapeDtypeStruct((B, OUT_PAD), jnp.float32),
        # No grid: one kernel invocation, whole arrays placed in VMEM.
        in_specs=[pl.BlockSpec(memory_space=pltpu.MemorySpace.VMEM)] * 7,
        out_specs=pl.BlockSpec(memory_space=pltpu.MemorySpace.VMEM),
        cost_estimate=cost,
    )(x, w1p, b1p, w2p, b2p, w3row, b3p)
    return out_pad[:, :1]                               # (B, 1)


def init_params(key, input_size=INPUT_SIZE, hidden_size=HIDDEN_SIZE):
    # Mirrors nn.init.normal_(std=0.02) for weights, zeros for biases.
    # w1/w2 stored as (in_features, out_features) == nn.Linear.weight.T.
    k1, k2, k3 = jax.random.split(key, 3)
    w1 = 0.02 * jax.random.normal(k1, (input_size, hidden_size), jnp.float32)
    b1 = jnp.zeros((1, hidden_size), jnp.float32)
    w2 = 0.02 * jax.random.normal(k2, (hidden_size, hidden_size), jnp.float32)
    b2 = jnp.zeros((1, hidden_size), jnp.float32)
    w3 = 0.02 * jax.random.normal(k3, (hidden_size, 1), jnp.float32)
    b3 = jnp.zeros((1, 1), jnp.float32)
    return w1, b1, w2, b2, w3, b3


def reference_forward(x, w1, b1, w2, b2, w3, b3):
    h1 = jax.nn.elu(x @ w1 + b1)
    h2 = jax.nn.elu(h1 @ w2 + b2)
    return h2 @ w3 + b3


if __name__ == "__main__":
    key = jax.random.PRNGKey(0)
    kx1, kx2, kp = jax.random.split(key, 3)

    # Joint and (shuffled) marginal minibatches, evaluated in ONE launch.
    x_joint = jax.random.normal(kx1, (BATCH, INPUT_SIZE), jnp.float32)
    x_marg = jax.random.normal(kx2, (BATCH, INPUT_SIZE), jnp.float32)
    x = jnp.concatenate([x_joint, x_marg], axis=0)      # (64, 4)

    params = init_params(kp)
    padded = pad_params(*params)                        # pad/cast ONCE

    out = mine_forward(x, *padded)
    out = jax.block_until_ready(out)

    ref = reference_forward(x, *params)
    assert out.shape == (2 * BATCH, 1)
    # Tolerance covers the bf16-operand layer-2 MXU pass vs. the XLA
    # reference's default-precision f32 matmuls.
    assert jnp.allclose(out, ref, atol=5e-4, rtol=2e-2), (
        f"max abs diff {float(jnp.max(jnp.abs(out - ref)))}")

    print("KERNEL_OK")
</pallas_src>

<mosaic_0001>
module attributes {stable_mosaic.version = 11 : i64} {
  func.func @mine_kernel(%arg0: memref<64x4xf32, #tpu.memory_space<vmem>>, %arg1: memref<4x128xf32, #tpu.memory_space<vmem>>, %arg2: memref<1x128xf32, #tpu.memory_space<vmem>>, %arg3: memref<128x128xbf16, #tpu.memory_space<vmem>>, %arg4: memref<1x128xf32, #tpu.memory_space<vmem>>, %arg5: memref<1x128xf32, #tpu.memory_space<vmem>>, %arg6: memref<1x1xf32, #tpu.memory_space<vmem>>, %arg7: memref<64x128xf32, #tpu.memory_space<vmem>>) attributes {dimension_semantics = [], scalar_prefetch = 0 : i64, scratch_operands = 0 : i64, tpu.core_type = #tpu.core_type<tc>} {
    %c0 = arith.constant 0 : index
    %c0_0 = arith.constant 0 : index
    %0 = vector.load %arg0[%c0, %c0_0] : memref<64x4xf32, #tpu.memory_space<vmem>>, vector<64x4xf32>
    %c0_1 = arith.constant 0 : index
    %c0_2 = arith.constant 0 : index
    %1 = vector.load %arg1[%c0_1, %c0_2] : memref<4x128xf32, #tpu.memory_space<vmem>>, vector<4x128xf32>
    %c0_3 = arith.constant 0 : index
    %c0_4 = arith.constant 0 : index
    %2 = vector.load %arg2[%c0_3, %c0_4] : memref<1x128xf32, #tpu.memory_space<vmem>>, vector<1x128xf32>
    %3 = vector.extract_strided_slice %0 {offsets = [0, 0], sizes = [64, 1], strides = [1, 1]} : vector<64x4xf32> to vector<64x1xf32>
    %4 = vector.extract_strided_slice %1 {offsets = [0, 0], sizes = [1, 128], strides = [1, 1]} : vector<4x128xf32> to vector<1x128xf32>
    %5 = vector.broadcast %3 : vector<64x1xf32> to vector<64x128xf32>
    %6 = vector.broadcast %4 : vector<1x128xf32> to vector<64x128xf32>
    %7 = arith.mulf %5, %6 : vector<64x128xf32>
    %8 = vector.broadcast %2 : vector<1x128xf32> to vector<64x128xf32>
    %9 = arith.addf %8, %7 : vector<64x128xf32>
    %10 = vector.extract_strided_slice %0 {offsets = [0, 1], sizes = [64, 1], strides = [1, 1]} : vector<64x4xf32> to vector<64x1xf32>
    %11 = vector.extract_strided_slice %1 {offsets = [1, 0], sizes = [1, 128], strides = [1, 1]} : vector<4x128xf32> to vector<1x128xf32>
    %12 = vector.broadcast %10 : vector<64x1xf32> to vector<64x128xf32>
    %13 = vector.broadcast %11 : vector<1x128xf32> to vector<64x128xf32>
    %14 = arith.mulf %12, %13 : vector<64x128xf32>
    %15 = arith.addf %9, %14 : vector<64x128xf32>
    %16 = vector.extract_strided_slice %0 {offsets = [0, 2], sizes = [64, 1], strides = [1, 1]} : vector<64x4xf32> to vector<64x1xf32>
    %17 = vector.extract_strided_slice %1 {offsets = [2, 0], sizes = [1, 128], strides = [1, 1]} : vector<4x128xf32> to vector<1x128xf32>
    %18 = vector.broadcast %16 : vector<64x1xf32> to vector<64x128xf32>
    %19 = vector.broadcast %17 : vector<1x128xf32> to vector<64x128xf32>
    %20 = arith.mulf %18, %19 : vector<64x128xf32>
    %21 = arith.addf %15, %20 : vector<64x128xf32>
    %22 = vector.extract_strided_slice %0 {offsets = [0, 3], sizes = [64, 1], strides = [1, 1]} : vector<64x4xf32> to vector<64x1xf32>
    %23 = vector.extract_strided_slice %1 {offsets = [3, 0], sizes = [1, 128], strides = [1, 1]} : vector<4x128xf32> to vector<1x128xf32>
    %24 = vector.broadcast %22 : vector<64x1xf32> to vector<64x128xf32>
    %25 = vector.broadcast %23 : vector<1x128xf32> to vector<64x128xf32>
    %26 = arith.mulf %24, %25 : vector<64x128xf32>
    %27 = arith.addf %21, %26 : vector<64x128xf32>
    %cst = arith.constant 0.000000e+00 : f32
    %28 = vector.broadcast %cst : f32 to vector<64x128xf32>
    %29 = arith.cmpf ogt, %27, %28 : vector<64x128xf32>
    %cst_5 = arith.constant 0.000000e+00 : f32
    %30 = vector.broadcast %cst_5 : f32 to vector<64x128xf32>
    %31 = arith.minimumf %27, %30 : vector<64x128xf32>
    %32 = math.exp %31 : vector<64x128xf32>
    %cst_6 = arith.constant 1.000000e+00 : f32
    %33 = vector.broadcast %cst_6 : f32 to vector<64x128xf32>
    %34 = arith.subf %32, %33 : vector<64x128xf32>
    %35 = arith.select %29, %27, %34 : vector<64x128xi1>, vector<64x128xf32>
    %36 = arith.truncf %35 : vector<64x128xf32> to vector<64x128xbf16>
    %c0_7 = arith.constant 0 : index
    %c0_8 = arith.constant 0 : index
    %37 = vector.load %arg3[%c0_7, %c0_8] : memref<128x128xbf16, #tpu.memory_space<vmem>>, vector<128x128xbf16>
    %cst_9 = arith.constant dense<0.000000e+00> : vector<64x128xf32>
    %38 = tpu.matmul %36, %37, %cst_9 {dimension_numbers = #tpu.dot_dimension_numbers<[1], [0], [0], [1], [0, 0, 1, 1], [], []>} : vector<64x128xbf16>, vector<128x128xbf16>, vector<64x128xf32> -> vector<64x128xf32>
    %c0_10 = arith.constant 0 : index
    %c0_11 = arith.constant 0 : index
    %39 = vector.load %arg4[%c0_10, %c0_11] : memref<1x128xf32, #tpu.memory_space<vmem>>, vector<1x128xf32>
    %40 = vector.broadcast %39 : vector<1x128xf32> to vector<64x128xf32>
    %41 = arith.addf %38, %40 : vector<64x128xf32>
    %cst_12 = arith.constant 0.000000e+00 : f32
    %42 = vector.broadcast %cst_12 : f32 to vector<64x128xf32>
    %43 = arith.cmpf ogt, %41, %42 : vector<64x128xf32>
    %cst_13 = arith.constant 0.000000e+00 : f32
    %44 = vector.broadcast %cst_13 : f32 to vector<64x128xf32>
    %45 = arith.minimumf %41, %44 : vector<64x128xf32>
    %46 = math.exp %45 : vector<64x128xf32>
    %cst_14 = arith.constant 1.000000e+00 : f32
    %47 = vector.broadcast %cst_14 : f32 to vector<64x128xf32>
    %48 = arith.subf %46, %47 : vector<64x128xf32>
    %49 = arith.select %43, %41, %48 : vector<64x128xi1>, vector<64x128xf32>
    %c0_15 = arith.constant 0 : index
    %c0_16 = arith.constant 0 : index
    %50 = vector.load %arg5[%c0_15, %c0_16] : memref<1x128xf32, #tpu.memory_space<vmem>>, vector<1x128xf32>
    %51 = vector.broadcast %50 : vector<1x128xf32> to vector<64x128xf32>
    %52 = arith.mulf %49, %51 : vector<64x128xf32>
    %cst_17 = arith.constant dense<0.000000e+00> : vector<64xf32>
    %53 = vector.multi_reduction <add>, %52, %cst_17 [1] : vector<64x128xf32> to vector<64xf32>
    %54 = vector.shape_cast %53 : vector<64xf32> to vector<64x1xf32>
    %c0_18 = arith.constant 0 : index
    %c0_19 = arith.constant 0 : index
    %55 = vector.load %arg6[%c0_18, %c0_19] : memref<1x1xf32, #tpu.memory_space<vmem>>, vector<1x1xf32>
    %56 = vector.broadcast %55 : vector<1x1xf32> to vector<64x1xf32>
    %57 = arith.addf %54, %56 : vector<64x1xf32>
    %58 = vector.shape_cast %57 : vector<64x1xf32> to vector<64x1xf32>
    %59 = vector.broadcast %58 : vector<64x1xf32> to vector<64x128xf32>
    %c0_20 = arith.constant 0 : index
    %c0_21 = arith.constant 0 : index
    %60 = vector.load %arg7[%c0_20, %c0_21] : memref<64x128xf32, #tpu.memory_space<vmem>>, vector<64x128xf32>
    tpu.vector_store %arg7[%c0_20, %c0_21], %59 {strides = array<i32>} : memref<64x128xf32, #tpu.memory_space<vmem>>, vector<64x128xf32>,
    return
  }
}

</mosaic_0001>

<llo_original>
// kernel: tpu_custom_call.1
$region0: #{tpu_custom_call.1}
  #allocation0 [shape = 'u32[]', space=smem, size = 0x4, offset = 0x4, fixed_abs, tag = 'smem constant byte address 0x4 - core index']
  #allocation1 [shape = 'u32[72,128]{1,0:T(1,128)}', space=vmem, size = 0x9000, scoped, tag = 'internal scratch']
  #allocation2 [shape = 'f32[1,1]{1,0:T(1,128)S(1)}', space=vmem, size = 0x200, scoped, tag = 'scoped memory for tpu_custom_call.1']
  %s0 = inlined_call_operand.vmem [shape: f32[64,4], index: 0, kind: input, shape index: {}]
  %s1 = inlined_call_operand.vmem [shape: f32[4,128], index: 1, kind: input, shape index: {}]
  %s2 = inlined_call_operand.vmem [shape: f32[1,128], index: 2, kind: input, shape index: {}]
  %s3 = inlined_call_operand.vmem [shape: bf16[128,128], index: 3, kind: input, shape index: {}]
  %s4 = inlined_call_operand.vmem [shape: f32[1,128], index: 4, kind: input, shape index: {}]
  %s5 = inlined_call_operand.vmem [shape: f32[1,128], index: 5, kind: input, shape index: {}]
  %s6 = inlined_call_operand.<no memory space> [shape: f32[1,1], index: 6, kind: input, shape index: {}]
  %s7 = inlined_call_operand.hbm [shape: f32[64,128], index: 7, kind: output, shape index: {}]
  %s8 = sld [smem:[#allocation0]]
  $region38: #{tpu_custom_call.1} parent=0
    _
  %s10 = ssub.s32 1, %s8
  %s11 = scalar_select 0, %s10, %s8
  %v12 = vstv %s6
  %13 = vst [vmem:[#allocation2] sm:$0x1] %v12
  $region1: #{tpu_custom_call.1} parent=0
    #allocation3 [shape = 'u8[32768]{0}', space=vmem, size = 0x8000, scoped, tag = 'output window, operand 0, single buffered']
    #allocation4 [shape = 's32[1]{0}', space=sflag, size = 0x4, scoped, tag = 'scoped memory for tpu_custom_call.1']
    %14 = vsyncpa [#allocation4], 0
    // Predicated region
    $region2: #{tpu_custom_call.1} parent=1 // pred_check
      _
    $region3: #{tpu_custom_call.1} parent=1 // pred_check_branch
      %16 = sbr.rel (0) target = $region5
    $region4: #{tpu_custom_call.1} parent=1 // pred_region
      _
    $region5: #{tpu_custom_call.1} parent=1 // pred_fallthru
      _
    // Predicated region
    $region6: #{tpu_custom_call.1} parent=1 // pred_check
      _
    $region7: #{tpu_custom_call.1} parent=1 // pred_check_branch
      %18 = sbr.rel (0) target = $region9
    $region8: #{tpu_custom_call.1} parent=1 // pred_region
      _
    $region9: #{tpu_custom_call.1} parent=1 // pred_fallthru
      _
    // Predicated region
    $region10: #{tpu_custom_call.1} parent=1 // pred_check
      _
    $region11: #{tpu_custom_call.1} parent=1 // pred_check_branch
      %20 = sbr.rel (0) target = $region13
    $region12: #{tpu_custom_call.1} parent=1 // pred_region
      _
    $region13: #{tpu_custom_call.1} parent=1 // pred_fallthru
      _
    // Predicated region
    $region14: #{tpu_custom_call.1} parent=1 // pred_check
      _
    $region15: #{tpu_custom_call.1} parent=1 // pred_check_branch
      %22 = sbr.rel (0) target = $region17
    $region16: #{tpu_custom_call.1} parent=1 // pred_region
      _
    $region17: #{tpu_custom_call.1} parent=1 // pred_fallthru
      _
    // Predicated region
    $region18: #{tpu_custom_call.1} parent=1 // pred_check
      _
    $region19: #{tpu_custom_call.1} parent=1 // pred_check_branch
      %24 = sbr.rel (0) target = $region21
    $region20: #{tpu_custom_call.1} parent=1 // pred_region
      _
    $region21: #{tpu_custom_call.1} parent=1 // pred_fallthru
      _
    // Predicated region
    $region22: #{tpu_custom_call.1} parent=1 // pred_check
      _
    $region23: #{tpu_custom_call.1} parent=1 // pred_check_branch
      %26 = sbr.rel (0) target = $region25
    $region24: #{tpu_custom_call.1} parent=1 // pred_region
      _
    $region25: #{tpu_custom_call.1} parent=1 // pred_fallthru
      _
    // Predicated region
    $region26: #{tpu_custom_call.1} parent=1 // pred_check
      _
    $region27: #{tpu_custom_call.1} parent=1 // pred_check_branch
      %28 = sbr.rel (0) target = $region29
    $region28: #{tpu_custom_call.1} parent=1 // pred_region
      _
    $region29: #{tpu_custom_call.1} parent=1 // pred_fallthru
      _
    %v29 = vld [vmem:[%s0] sm:$0xff]
    %v30 = vld [vmem:[%s0 + $0x8] sm:$0xff]
    %v31 = vld [vmem:[%s0 + $0x10] sm:$0xff]
    %v32 = vld [vmem:[%s0 + $0x18] sm:$0xff]
    %v33 = vld [vmem:[%s0 + $0x20] sm:$0xff]
    %v34 = vld [vmem:[%s0 + $0x28] sm:$0xff]
    %v35 = vld [vmem:[%s0 + $0x30] sm:$0xff]
    %v36 = vld [vmem:[%s0 + $0x38] sm:$0xff]
    %v37 = vld [vmem:[%s1] sm:$0xf]
    %v38 = vld [vmem:[%s2] sm:$0x1]
    %40 = vset.pattern.permute.xlu0 0
    %41 = vperm.xlu0 %40, %v29
    %v42 = vpop.permute.xlu0 %41
    %45 = vset.pattern.permute.xlu0 0
    %46 = vperm.xlu0 %45, %v30
    %v47 = vpop.permute.xlu0 %46
    %50 = vset.pattern.permute.xlu0 0
    %51 = vperm.xlu0 %50, %v31
    %v52 = vpop.permute.xlu0 %51
    %55 = vset.pattern.permute.xlu0 0
    %56 = vperm.xlu0 %55, %v32
    %v57 = vpop.permute.xlu0 %56
    %60 = vset.pattern.permute.xlu0 0
    %61 = vperm.xlu0 %60, %v33
    %v62 = vpop.permute.xlu0 %61
    %65 = vset.pattern.permute.xlu0 0
    %66 = vperm.xlu0 %65, %v34
    %v67 = vpop.permute.xlu0 %66
    %70 = vset.pattern.permute.xlu0 0
    %71 = vperm.xlu0 %70, %v35
    %v72 = vpop.permute.xlu0 %71
    %75 = vset.pattern.permute.xlu0 0
    %76 = vperm.xlu0 %75, %v36
    %v77 = vpop.permute.xlu0 %76
    %v79 = vperm.slane %v37, 0
    %v80 = vmul.f32 %v42, %v79
    %v81 = vmul.f32 %v47, %v79
    %v82 = vmul.f32 %v52, %v79
    %v83 = vmul.f32 %v57, %v79
    %v84 = vmul.f32 %v62, %v79
    %v85 = vmul.f32 %v67, %v79
    %v86 = vmul.f32 %v72, %v79
    %v87 = vmul.f32 %v77, %v79
    %v89 = vperm.slane %v38, 0
    %v91 = vadd.f32 %v89, %v80
    %v92 = vadd.f32 %v89, %v81
    %v93 = vadd.f32 %v89, %v82
    %v94 = vadd.f32 %v89, %v83
    %v95 = vadd.f32 %v89, %v84
    %v96 = vadd.f32 %v89, %v85
    %v97 = vadd.f32 %v89, %v86
    %v98 = vadd.f32 %v89, %v87
    %99 = vset.pattern.permute.xlu0 1
    %100 = vperm.xlu0 %99, %v29
    %v101 = vpop.permute.xlu0 %100
    %103 = vset.pattern.permute.xlu0 1
    %104 = vperm.xlu0 %103, %v30
    %v105 = vpop.permute.xlu0 %104
    %107 = vset.pattern.permute.xlu0 1
    %108 = vperm.xlu0 %107, %v31
    %v109 = vpop.permute.xlu0 %108
    %111 = vset.pattern.permute.xlu0 1
    %112 = vperm.xlu0 %111, %v32
    %v113 = vpop.permute.xlu0 %112
    %115 = vset.pattern.permute.xlu0 1
    %116 = vperm.xlu0 %115, %v33
    %v117 = vpop.permute.xlu0 %116
    %119 = vset.pattern.permute.xlu0 1
    %120 = vperm.xlu0 %119, %v34
    %v121 = vpop.permute.xlu0 %120
    %123 = vset.pattern.permute.xlu0 1
    %124 = vperm.xlu0 %123, %v35
    %v125 = vpop.permute.xlu0 %124
    %127 = vset.pattern.permute.xlu0 1
    %128 = vperm.xlu0 %127, %v36
    %v129 = vpop.permute.xlu0 %128
    %v131 = vperm.slane %v37, 1
    %v132 = vmul.f32 %v101, %v131
    %v133 = vmul.f32 %v105, %v131
    %v134 = vmul.f32 %v109, %v131
    %v135 = vmul.f32 %v113, %v131
    %v136 = vmul.f32 %v117, %v131
    %v137 = vmul.f32 %v121, %v131
    %v138 = vmul.f32 %v125, %v131
    %v139 = vmul.f32 %v129, %v131
    %v140 = vadd.f32 %v91, %v132
    %v141 = vadd.f32 %v92, %v133
    %v142 = vadd.f32 %v93, %v134
    %v143 = vadd.f32 %v94, %v135
    %v144 = vadd.f32 %v95, %v136
    %v145 = vadd.f32 %v96, %v137
    %v146 = vadd.f32 %v97, %v138
    %v147 = vadd.f32 %v98, %v139
    %148 = vset.pattern.permute.xlu0 2
    %149 = vperm.xlu0 %148, %v29
    %v150 = vpop.permute.xlu0 %149
    %152 = vset.pattern.permute.xlu0 2
    %153 = vperm.xlu0 %152, %v30
    %v154 = vpop.permute.xlu0 %153
    %156 = vset.pattern.permute.xlu0 2
    %157 = vperm.xlu0 %156, %v31
    %v158 = vpop.permute.xlu0 %157
    %160 = vset.pattern.permute.xlu0 2
    %161 = vperm.xlu0 %160, %v32
    %v162 = vpop.permute.xlu0 %161
    %164 = vset.pattern.permute.xlu0 2
    %165 = vperm.xlu0 %164, %v33
    %v166 = vpop.permute.xlu0 %165
    %168 = vset.pattern.permute.xlu0 2
    %169 = vperm.xlu0 %168, %v34
    %v170 = vpop.permute.xlu0 %169
    %172 = vset.pattern.permute.xlu0 2
    %173 = vperm.xlu0 %172, %v35
    %v174 = vpop.permute.xlu0 %173
    %176 = vset.pattern.permute.xlu0 2
    %177 = vperm.xlu0 %176, %v36
    %v178 = vpop.permute.xlu0 %177
    %v180 = vperm.slane %v37, 2
    %v181 = vmul.f32 %v150, %v180
    %v182 = vmul.f32 %v154, %v180
    %v183 = vmul.f32 %v158, %v180
    %v184 = vmul.f32 %v162, %v180
    %v185 = vmul.f32 %v166, %v180
    %v186 = vmul.f32 %v170, %v180
    %v187 = vmul.f32 %v174, %v180
    %v188 = vmul.f32 %v178, %v180
    %v189 = vadd.f32 %v140, %v181
    %v190 = vadd.f32 %v141, %v182
    %v191 = vadd.f32 %v142, %v183
    %v192 = vadd.f32 %v143, %v184
    %v193 = vadd.f32 %v144, %v185
    %v194 = vadd.f32 %v145, %v186
    %v195 = vadd.f32 %v146, %v187
    %v196 = vadd.f32 %v147, %v188
    %197 = vset.pattern.permute.xlu0 3
    %198 = vperm.xlu0 %197, %v29
    %v199 = vpop.permute.xlu0 %198
    %201 = vset.pattern.permute.xlu0 3
    %202 = vperm.xlu0 %201, %v30
    %v203 = vpop.permute.xlu0 %202
    %205 = vset.pattern.permute.xlu0 3
    %206 = vperm.xlu0 %205, %v31
    %v207 = vpop.permute.xlu0 %206
    %209 = vset.pattern.permute.xlu0 3
    %210 = vperm.xlu0 %209, %v32
    %v211 = vpop.permute.xlu0 %210
    %213 = vset.pattern.permute.xlu0 3
    %214 = vperm.xlu0 %213, %v33
    %v215 = vpop.permute.xlu0 %214
    %217 = vset.pattern.permute.xlu0 3
    %218 = vperm.xlu0 %217, %v34
    %v219 = vpop.permute.xlu0 %218
    %221 = vset.pattern.permute.xlu0 3
    %222 = vperm.xlu0 %221, %v35
    %v223 = vpop.permute.xlu0 %222
    %225 = vset.pattern.permute.xlu0 3
    %226 = vperm.xlu0 %225, %v36
    %v227 = vpop.permute.xlu0 %226
    %v229 = vperm.slane %v37, 3
    %v230 = vmul.f32 %v199, %v229
    %v231 = vmul.f32 %v203, %v229
    %v232 = vmul.f32 %v207, %v229
    %v233 = vmul.f32 %v211, %v229
    %v234 = vmul.f32 %v215, %v229
    %v235 = vmul.f32 %v219, %v229
    %v236 = vmul.f32 %v223, %v229
    %v237 = vmul.f32 %v227, %v229
    %v238 = vadd.f32 %v189, %v230
    %v239 = vadd.f32 %v190, %v231
    %v240 = vadd.f32 %v191, %v232
    %v241 = vadd.f32 %v192, %v233
    %v242 = vadd.f32 %v193, %v234
    %v243 = vadd.f32 %v194, %v235
    %v244 = vadd.f32 %v195, %v236
    %v245 = vadd.f32 %v196, %v237
    %vm246 = vcmp.gt.f32.partialorder %v238, 0.0
    %vm247 = vcmp.gt.f32.partialorder %v239, 0.0
    %vm248 = vcmp.gt.f32.partialorder %v240, 0.0
    %vm249 = vcmp.gt.f32.partialorder %v241, 0.0
    %vm250 = vcmp.gt.f32.partialorder %v242, 0.0
    %vm251 = vcmp.gt.f32.partialorder %v243, 0.0
    %vm252 = vcmp.gt.f32.partialorder %v244, 0.0
    %vm253 = vcmp.gt.f32.partialorder %v245, 0.0
    %v254 = vmin.f32 %v238, 0.0
    %v255 = vmin.f32 %v239, 0.0
    %v256 = vmin.f32 %v240, 0.0
    %v257 = vmin.f32 %v241, 0.0
    %v258 = vmin.f32 %v242, 0.0
    %v259 = vmin.f32 %v243, 0.0
    %v260 = vmin.f32 %v244, 0.0
    %v261 = vmin.f32 %v245, 0.0
    %v262 = vmul.f32 %v254, 1.442695
    %v263 = vpow.pop %v262
    %v264 = vmul.f32 %v255, 1.442695
    %v265 = vpow.pop %v264
    %v266 = vmul.f32 %v256, 1.442695
    %v267 = vpow.pop %v266
    %v268 = vmul.f32 %v257, 1.442695
    %v269 = vpow.pop %v268
    %v270 = vmul.f32 %v258, 1.442695
    %v271 = vpow.pop %v270
    %v272 = vmul.f32 %v259, 1.442695
    %v273 = vpow.pop %v272
    %v274 = vmul.f32 %v260, 1.442695
    %v275 = vpow.pop %v274
    %v276 = vmul.f32 %v261, 1.442695
    %v277 = vpow.pop %v276
    %v278 = vsub.f32 %v263, 1.0
    %v279 = vsub.f32 %v265, 1.0
    %v280 = vsub.f32 %v267, 1.0
    %v281 = vsub.f32 %v269, 1.0
    %v282 = vsub.f32 %v271, 1.0
    %v283 = vsub.f32 %v273, 1.0
    %v284 = vsub.f32 %v275, 1.0
    %v285 = vsub.f32 %v277, 1.0
    %v286 = vsel %vm246, %v238, %v278
    %v287 = vsel %vm247, %v239, %v279
    %v288 = vsel %vm248, %v240, %v280
    %v289 = vsel %vm249, %v241, %v281
    %v290 = vsel %vm250, %v242, %v282
    %v291 = vsel %vm251, %v243, %v283
    %v292 = vsel %vm252, %v244, %v284
    %v293 = vsel %vm253, %v245, %v285
    %v294 = vpack.c.bf16 %v287, %v286
    %v295 = vpack.c.bf16 %v289, %v288
    %v296 = vpack.c.bf16 %v291, %v290
    %v297 = vpack.c.bf16 %v293, %v292
    %v298 = vld [vmem:[%s3] sm:$0xf]
    %v299 = vld [vmem:[%s3 + $0x4] sm:$0xf]
    %v300 = vld [vmem:[%s3 + $0x8] sm:$0xf]
    %v301 = vld [vmem:[%s3 + $0xc] sm:$0xf]
    %v302 = vld [vmem:[%s3 + $0x10] sm:$0xf]
    %v303 = vld [vmem:[%s3 + $0x14] sm:$0xf]
    %v304 = vld [vmem:[%s3 + $0x18] sm:$0xf]
    %v305 = vld [vmem:[%s3 + $0x1c] sm:$0xf]
    %v306 = vld [vmem:[%s3 + $0x20] sm:$0xf]
    %v307 = vld [vmem:[%s3 + $0x24] sm:$0xf]
    %v308 = vld [vmem:[%s3 + $0x28] sm:$0xf]
    %v309 = vld [vmem:[%s3 + $0x2c] sm:$0xf]
    %v310 = vld [vmem:[%s3 + $0x30] sm:$0xf]
    %v311 = vld [vmem:[%s3 + $0x34] sm:$0xf]
    %v312 = vld [vmem:[%s3 + $0x38] sm:$0xf]
    %v313 = vld [vmem:[%s3 + $0x3c] sm:$0xf]
    %v314 = vld [vmem:[%s4] sm:$0x1]
    %v316 = vperm.slane %v314, 0
    %v334 = vunpack.c.l.b16 %v298
    %v335 = vunpack.c.l.b16 %v299
    %v336 = vunpack.c.l.b16 %v300
    %v337 = vunpack.c.l.b16 %v301
    %v338 = vunpack.c.l.b16 %v302
    %v339 = vunpack.c.l.b16 %v303
    %v340 = vunpack.c.l.b16 %v304
    %v341 = vunpack.c.l.b16 %v305
    %v342 = vunpack.c.l.b16 %v306
    %v343 = vunpack.c.l.b16 %v307
    %v344 = vunpack.c.l.b16 %v308
    %v345 = vunpack.c.l.b16 %v309
    %v346 = vunpack.c.l.b16 %v310
    %v347 = vunpack.c.l.b16 %v311
    %v348 = vunpack.c.l.b16 %v312
    %v349 = vunpack.c.l.b16 %v313
    %v350 = vpack.c.b16 %v335, %v334
    %v351 = vpack.c.b16 %v337, %v336
    %v352 = vpack.c.b16 %v339, %v338
    %v353 = vpack.c.b16 %v341, %v340
    %v354 = vpack.c.b16 %v343, %v342
    %v355 = vpack.c.b16 %v345, %v344
    %v356 = vpack.c.b16 %v347, %v346
    %v357 = vpack.c.b16 %v349, %v348
    %366 = vmatpush.bf16.msra.mxu0 %v357
    %367 = vmatpush.bf16.msra.mxu0 %v356
    %368 = vmatpush.bf16.msra.mxu0 %v355
    %369 = vmatpush.bf16.msra.mxu0 %v354
    %370 = vmatpush.bf16.msra.mxu0 %v353
    %371 = vmatpush.bf16.msra.mxu0 %v352
    %372 = vmatpush.bf16.msra.mxu0 %v351
    %373 = vmatpush.bf16.msra.mxu0 %v350
    %374 = vmatmul.bf16.gmra.mxu0 %v294
    %v375 = vpop.f32.mrf.mxu0
    %v376 = vadd.f32 %v316, %v375
    %v377 = vpop.f32.mrf.mxu0
    %v378 = vadd.f32 %v316, %v377
    %379 = vmatmul.bf16.gmra.mxu0 %v295
    %v380 = vpop.f32.mrf.mxu0
    %v381 = vadd.f32 %v316, %v380
    %v382 = vpop.f32.mrf.mxu0
    %v383 = vadd.f32 %v316, %v382
    %384 = vmatmul.bf16.gmra.mxu0 %v296
    %v385 = vpop.f32.mrf.mxu0
    %v386 = vadd.f32 %v316, %v385
    %v387 = vpop.f32.mrf.mxu0
    %v388 = vadd.f32 %v316, %v387
    %389 = vmatmul.bf16.gmra.mxu0 %v297
    %v390 = vpop.f32.mrf.mxu0
    %v391 = vadd.f32 %v316, %v390
    %v392 = vpop.f32.mrf.mxu0
    %v393 = vadd.f32 %v316, %v392
    %394 = vdwg.mxu0
    %vm395 = vcmp.gt.f32.partialorder %v376, 0.0
    %vm396 = vcmp.gt.f32.partialorder %v378, 0.0
    %vm397 = vcmp.gt.f32.partialorder %v381, 0.0
    %vm398 = vcmp.gt.f32.partialorder %v383, 0.0
    %vm399 = vcmp.gt.f32.partialorder %v386, 0.0
    %vm400 = vcmp.gt.f32.partialorder %v388, 0.0
    %vm401 = vcmp.gt.f32.partialorder %v391, 0.0
    %vm402 = vcmp.gt.f32.partialorder %v393, 0.0
    %v403 = vmin.f32 %v376, 0.0
    %v404 = vmin.f32 %v378, 0.0
    %v405 = vmin.f32 %v381, 0.0
    %v406 = vmin.f32 %v383, 0.0
    %v407 = vmin.f32 %v386, 0.0
    %v408 = vmin.f32 %v388, 0.0
    %v409 = vmin.f32 %v391, 0.0
    %v410 = vmin.f32 %v393, 0.0
    %v411 = vmul.f32 %v403, 1.442695
    %v412 = vpow.pop %v411
    %v413 = vmul.f32 %v404, 1.442695
    %v414 = vpow.pop %v413
    %v415 = vmul.f32 %v405, 1.442695
    %v416 = vpow.pop %v415
    %v417 = vmul.f32 %v406, 1.442695
    %v418 = vpow.pop %v417
    %v419 = vmul.f32 %v407, 1.442695
    %v420 = vpow.pop %v419
    %v421 = vmul.f32 %v408, 1.442695
    %v422 = vpow.pop %v421
    %v423 = vmul.f32 %v409, 1.442695
    %v424 = vpow.pop %v423
    %v425 = vmul.f32 %v410, 1.442695
    %v426 = vpow.pop %v425
    %v427 = vsub.f32 %v412, 1.0
    %v428 = vsub.f32 %v414, 1.0
    %v429 = vsub.f32 %v416, 1.0
    %v430 = vsub.f32 %v418, 1.0
    %v431 = vsub.f32 %v420, 1.0
    %v432 = vsub.f32 %v422, 1.0
    %v433 = vsub.f32 %v424, 1.0
    %v434 = vsub.f32 %v426, 1.0
    %v435 = vsel %vm395, %v376, %v427
    %v436 = vsel %vm396, %v378, %v428
    %v437 = vsel %vm397, %v381, %v429
    %v438 = vsel %vm398, %v383, %v430
    %v439 = vsel %vm399, %v386, %v431
    %v440 = vsel %vm400, %v388, %v432
    %v441 = vsel %vm401, %v391, %v433
    %v442 = vsel %vm402, %v393, %v434
    %v443 = vld [vmem:[%s5] sm:$0x1]
    %v445 = vperm.slane %v443, 0
    %v447 = vmul.f32 %v435, %v445
    %v448 = vmul.f32 %v436, %v445
    %v449 = vmul.f32 %v437, %v445
    %v450 = vmul.f32 %v438, %v445
    %v451 = vmul.f32 %v439, %v445
    %v452 = vmul.f32 %v440, %v445
    %v453 = vmul.f32 %v441, %v445
    %v454 = vmul.f32 %v442, %v445
    %455 = vadd.xlane.f32.xlu0 %v447
    %v456 = vpop.xlane.xlu0 %455
    %457 = vadd.xlane.f32.xlu0 %v448
    %v458 = vpop.xlane.xlu0 %457
    %459 = vadd.xlane.f32.xlu0 %v449
    %v460 = vpop.xlane.xlu0 %459
    %461 = vadd.xlane.f32.xlu0 %v450
    %v462 = vpop.xlane.xlu0 %461
    %463 = vadd.xlane.f32.xlu0 %v451
    %v464 = vpop.xlane.xlu0 %463
    %465 = vadd.xlane.f32.xlu0 %v452
    %v466 = vpop.xlane.xlu0 %465
    %467 = vadd.xlane.f32.xlu0 %v453
    %v468 = vpop.xlane.xlu0 %467
    %469 = vadd.xlane.f32.xlu0 %v454
    %v470 = vpop.xlane.xlu0 %469
    %v471 = vld [vmem:[#allocation2] sm:$0x1]
    %v473 = vperm.slane %v471, 0
    %v475 = vadd.f32 %v456, %v473
    %v476 = vadd.f32 %v458, %v473
    %v477 = vadd.f32 %v460, %v473
    %v478 = vadd.f32 %v462, %v473
    %v479 = vadd.f32 %v464, %v473
    %v480 = vadd.f32 %v466, %v473
    %v481 = vadd.f32 %v468, %v473
    %v482 = vadd.f32 %v470, %v473
    %484 = vset.pattern.permute.xlu0 0
    %485 = vperm.xlu0 %484, %v475
    %v486 = vpop.permute.xlu0 %485
    %489 = vset.pattern.permute.xlu0 0
    %490 = vperm.xlu0 %489, %v476
    %v491 = vpop.permute.xlu0 %490
    %494 = vset.pattern.permute.xlu0 0
    %495 = vperm.xlu0 %494, %v477
    %v496 = vpop.permute.xlu0 %495
    %499 = vset.pattern.permute.xlu0 0
    %500 = vperm.xlu0 %499, %v478
    %v501 = vpop.permute.xlu0 %500
    %504 = vset.pattern.permute.xlu0 0
    %505 = vperm.xlu0 %504, %v479
    %v506 = vpop.permute.xlu0 %505
    %509 = vset.pattern.permute.xlu0 0
    %510 = vperm.xlu0 %509, %v480
    %v511 = vpop.permute.xlu0 %510
    %514 = vset.pattern.permute.xlu0 0
    %515 = vperm.xlu0 %514, %v481
    %v516 = vpop.permute.xlu0 %515
    %519 = vset.pattern.permute.xlu0 0
    %520 = vperm.xlu0 %519, %v482
    %v521 = vpop.permute.xlu0 %520
    %523 = vst [vmem:[#allocation3] sm:$0xff] %v486
    %524 = vst [vmem:[#allocation3 + $0x8] sm:$0xff] %v491
    %525 = vst [vmem:[#allocation3 + $0x10] sm:$0xff] %v496
    %526 = vst [vmem:[#allocation3 + $0x18] sm:$0xff] %v501
    %527 = vst [vmem:[#allocation3 + $0x20] sm:$0xff] %v506
    %528 = vst [vmem:[#allocation3 + $0x28] sm:$0xff] %v511
    %529 = vst [vmem:[#allocation3 + $0x30] sm:$0xff] %v516
    %530 = vst [vmem:[#allocation3 + $0x38] sm:$0xff] %v521
    // Predicated region
    $region30: #{tpu_custom_call.1} parent=1 // pred_check
      _
    $region31: #{tpu_custom_call.1} parent=1 // pred_check_branch
      %532 = sbr.rel (0) target = $region33
    $region32: #{tpu_custom_call.1} parent=1 // pred_region
      %534 = vsyncadd [#allocation4], 0
      %s535 = sshll.u32 [#allocation3], 4
      %s536 = int_to_ptr.vmem [resolvable:$true] %s535
      %s537 = sshll.u32 %s7, 4
      %s538 = int_to_ptr.hbm [resolvable:$true] %s537
      %543 = dma.vmem_to_hbm [thread:$0]  %s536, 1024, %s538, [#allocation4], 128, 128, 8
    $region33: #{tpu_custom_call.1} parent=1 // pred_fallthru
      _
    // Predicated region
    $region34: #{tpu_custom_call.1} parent=1 // pred_check
      _
    $region35: #{tpu_custom_call.1} parent=1 // pred_check_branch
      %545 = sbr.rel (0) target = $region37
    $region36: #{tpu_custom_call.1} parent=1 // pred_region
      %547 = dma.done [#allocation4], 1024
    $region37: #{tpu_custom_call.1} parent=1 // pred_fallthru
      _
    %548 = vsyncpa [#allocation4], 1

</llo_original>
